<compile_context>
chip_gen: v5e
topology: v5e:2x2
jax: 0.10.0
libtpu: 0.0.40
codegen_flags: <defaults>
</compile_context>

<pallas_src>
import functools

import jax
import jax.numpy as jnp
from jax.experimental import pallas as pl
from jax.experimental.pallas import tpu as pltpu


# MXU input dtype (accumulation stays f32). bf16 gives the fast MXU path on all gens.
_MXU_DTYPE = jnp.bfloat16

_TM_MAX, _TN_MAX, _TK_MAX = 512, 512, 2048
_LN_ROWS = 1024


def _round_up(x, m):
    return ((x + m - 1) // m) * m


@functools.lru_cache(maxsize=1)
def _vmem_limit_bytes():
    """Per-generation scoped-VMEM budget (v5e/v6e: 128 MiB physical, v7x: 64 MiB)."""
    try:
        cap = int(pltpu.get_tpu_info().vmem_capacity_bytes)
        return int(min(cap // 2, 64 * 1024 * 1024))
    except Exception:
        return 32 * 1024 * 1024      # conservative: fits the worst-case tile set (~21 MiB)


def _pick_tile(dim, max_tile, align):
    """Return (tile, padded_dim).

    dim <= max_tile -> tile == dim (full-extent block: legal per the (8,128)-or-full rule,
                       and requires NO jnp.pad copy of the operand).
    dim  > max_tile -> balanced split into ceil(dim/max_tile) tiles, each a multiple of
                       `align`; operand is padded only by the small remainder.
    """
    if dim <= max_tile:
        return dim, dim
    n = -(-dim // max_tile)
    tile = _round_up(-(-dim // n), align)
    return tile, _round_up(dim, tile)


# ----------------------------------------------------------------------------
# Row-tiled LayerNorm (standalone — used only where the LN output must be materialized)
# ----------------------------------------------------------------------------

def _layernorm_kernel(x_ref, g_ref, b_ref, o_ref):
    x = x_ref[...].astype(jnp.float32)
    mu = jnp.mean(x, axis=-1, keepdims=True)
    var = jnp.mean(jnp.square(x - mu), axis=-1, keepdims=True)
    y = (x - mu) * jax.lax.rsqrt(var + 1e-5)
    o_ref[...] = (y * g_ref[...].astype(jnp.float32)
                  + b_ref[...].astype(jnp.float32)).astype(o_ref.dtype)


def layernorm(x, gamma, beta):
    """x: [M, D] row-wise LayerNorm, tiled over rows."""
    M, D = x.shape
    m_align = 8 if jnp.dtype(x.dtype).itemsize == 4 else 16
    tm, Mp = _pick_tile(M, _LN_ROWS, m_align)
    x_p = x if Mp == M else jnp.pad(x, ((0, Mp - M), (0, 0)))
    out = pl.pallas_call(
        _layernorm_kernel,
        out_shape=jax.ShapeDtypeStruct((Mp, D), x.dtype),
        grid=(Mp // tm,),
        in_specs=[pl.BlockSpec((tm, D), lambda i: (i, 0)),
                  pl.BlockSpec((1, D), lambda i: (0, 0)),
                  pl.BlockSpec((1, D), lambda i: (0, 0))],
        out_specs=pl.BlockSpec((tm, D), lambda i: (i, 0)),
        compiler_params=pltpu.CompilerParams(
            dimension_semantics=("parallel",),
            vmem_limit_bytes=_vmem_limit_bytes()),
    )(x_p, gamma.reshape(1, D), beta.reshape(1, D))
    if Mp != M:
        out = out[:M]
    return out


# ----------------------------------------------------------------------------
# Tiled matmul with fused LayerNorm prologue and bias / QuickGELU / residual epilogue
# ----------------------------------------------------------------------------

def _mm_kernel(*refs, has_ln, has_bias, has_res, activation, mxu_dtype):
    it = iter(refs)
    a_ref = next(it)
    g_ref = next(it) if has_ln else None
    be_ref = next(it) if has_ln else None
    b_ref = next(it)
    bias_ref = next(it) if has_bias else None
    res_ref = next(it) if has_res else None
    o_ref = next(it)
    acc_ref = next(it)

    @pl.when(pl.program_id(2) == 0)
    def _():
        acc_ref[...] = jnp.zeros_like(acc_ref)

    if has_ln:
        # LayerNorm fused into the A-tile prologue (requires tk == K: full rows in-tile).
        a = a_ref[...].astype(jnp.float32)
        mu = jnp.mean(a, axis=-1, keepdims=True)
        var = jnp.mean(jnp.square(a - mu), axis=-1, keepdims=True)
        a = (a - mu) * jax.lax.rsqrt(var + 1e-5)
        a = a * g_ref[...].astype(jnp.float32) + be_ref[...].astype(jnp.float32)
        a_mx = a.astype(mxu_dtype)
    else:
        a_mx = a_ref[...].astype(mxu_dtype)

    acc_ref[...] += jnp.dot(a_mx, b_ref[...].astype(mxu_dtype),
                            preferred_element_type=jnp.float32)

    @pl.when(pl.program_id(2) == pl.num_programs(2) - 1)
    def _():
        acc = acc_ref[...]
        if has_bias:
            acc = acc + bias_ref[...].astype(jnp.float32)
        if activation == "quick_gelu":
            acc = acc * jax.nn.sigmoid(1.702 * acc)
        if has_res:
            acc = acc + res_ref[...].astype(jnp.float32)
        o_ref[...] = acc.astype(o_ref.dtype)


def matmul_bias(a, b, bias=None, residual=None, activation=None, ln=None):
    """out = epilogue((LN(a) if ln else a) @ b).

    epilogue: optional +bias -> QuickGELU -> +residual, all fused on-chip.
    a: [M, K], b: [K, N], bias: [N], residual: [M, N], ln: (gamma[K], beta[K]).
    """
    M, K = a.shape
    K2, N = b.shape
    assert K == K2
    out_dtype = a.dtype
    m_align = 8 if jnp.dtype(out_dtype).itemsize == 4 else 16

    tm, Mp = _pick_tile(M, _TM_MAX, m_align)
    tn, Np = _pick_tile(N, _TN_MAX, 128)
    tk, Kp = _pick_tile(K, _TK_MAX, 128)

    has_ln = ln is not None
    if has_ln and tk != K:
        # LN fusion needs the full row in a single K block; fall back to standalone LN.
        a = layernorm(a, ln[0], ln[1])
        has_ln = False

    a_p = a if (Mp == M and Kp == K) else jnp.pad(a, ((0, Mp - M), (0, Kp - K)))
    b_p = b if (Kp == K and Np == N) else jnp.pad(b, ((0, Kp - K), (0, Np - N)))

    inputs = [a_p]
    in_specs = [pl.BlockSpec((tm, tk), lambda i, j, k: (i, k))]
    if has_ln:
        inputs += [ln[0].reshape(1, K), ln[1].reshape(1, K)]
        in_specs += [pl.BlockSpec((1, tk), lambda i, j, k: (0, k)),
                     pl.BlockSpec((1, tk), lambda i, j, k: (0, k))]
    inputs.append(b_p)
    in_specs.append(pl.BlockSpec((tk, tn), lambda i, j, k: (k, j)))

    has_bias = bias is not None
    if has_bias:
        bias2 = bias.reshape(1, N)
        if Np != N:
            bias2 = jnp.pad(bias2, ((0, 0), (0, Np - N)))
        inputs.append(bias2)
        in_specs.append(pl.BlockSpec((1, tn), lambda i, j, k: (0, j)))

    has_res = residual is not None
    if has_res:
        r_p = residual if (Mp == M and Np == N) else jnp.pad(
            residual, ((0, Mp - M), (0, Np - N)))
        inputs.append(r_p)
        in_specs.append(pl.BlockSpec((tm, tn), lambda i, j, k: (i, j)))

    grid = (Mp // tm, Np // tn, Kp // tk)
    itemsize = jnp.dtype(out_dtype).itemsize
    flops = int(2 * Mp * Np * Kp)
    bytes_accessed = int((Mp * Kp + Kp * Np + Mp * Np * (1 + int(has_res))) * itemsize)
    transcendentals = int(Mp * Np) if activation == "quick_gelu" else 0

    kern = functools.partial(_mm_kernel, has_ln=has_ln, has_bias=has_bias,
                             has_res=has_res, activation=activation,
                             mxu_dtype=_MXU_DTYPE)
    out = pl.pallas_call(
        kern,
        out_shape=jax.ShapeDtypeStruct((Mp, Np), out_dtype),
        grid=grid,
        in_specs=in_specs,
        out_specs=pl.BlockSpec((tm, tn), lambda i, j, k: (i, j)),
        scratch_shapes=[pltpu.VMEM((tm, tn), jnp.float32)],
        compiler_params=pltpu.CompilerParams(
            dimension_semantics=("parallel", "parallel", "arbitrary"),
            vmem_limit_bytes=_vmem_limit_bytes()),
        cost_estimate=pl.CostEstimate(flops=flops, transcendentals=transcendentals,
                                      bytes_accessed=bytes_accessed),
    )(*inputs)
    if (Mp, Np) != (M, N):
        out = out[:M, :N]
    return out


# ----------------------------------------------------------------------------
# Multi-head attention: one grid step per batch element, packed-QKV input,
# per-head lane-slice stores into a lane-dense [S, H*Dh] output tile.
# ----------------------------------------------------------------------------

def _attn_kernel(qkv_ref, o_ref, *, n_heads, causal, scale, mxu_dtype):
    qkv = qkv_ref[0]                               # [S, 3*D], native dtype (no f32 upcast)
    S = qkv.shape[0]
    D = qkv.shape[1] // 3
    Dh = D // n_heads

    if causal:
        row = jax.lax.broadcasted_iota(jnp.int32, (S, S), 0)
        col = jax.lax.broadcasted_iota(jnp.int32, (S, S), 1)
        keep = col <= row

    for h in range(n_heads):                       # static unroll over heads
        qh = qkv[:, h * Dh:(h + 1) * Dh].astype(mxu_dtype)
        kh = qkv[:, D + h * Dh:D + (h + 1) * Dh].astype(mxu_dtype)
        vh = qkv[:, 2 * D + h * Dh:2 * D + (h + 1) * Dh].astype(mxu_dtype)
        s = jax.lax.dot_general(qh, kh, (((1,), (1,)), ((), ())),
                                preferred_element_type=jnp.float32) * scale
        if causal:
            s = jnp.where(keep, s, -1e30)
        m = jnp.max(s, axis=-1, keepdims=True)
        p = jnp.exp(s - m)
        p = p / jnp.sum(p, axis=-1, keepdims=True)          # exact softmax (matches torch)
        oh = jnp.dot(p.astype(mxu_dtype), vh, preferred_element_type=jnp.float32)
        # per-head slice store: bounds live ranges, no concat/relayout of all heads
        o_ref[0, :, h * Dh:(h + 1) * Dh] = oh.astype(o_ref.dtype)


def attention(qkv, n_heads, causal):
    """qkv: [B, S, 3*D] packed projections -> [B, S, D] attention output."""
    B, S, D3 = qkv.shape
    D = D3 // 3
    Dh = D // n_heads
    scale = 1.0 / float(Dh) ** 0.5
    kern = functools.partial(_attn_kernel, n_heads=n_heads, causal=causal,
                             scale=scale, mxu_dtype=_MXU_DTYPE)
    itemsize = jnp.dtype(qkv.dtype).itemsize
    # TODO(synk): for very small B on v7x, a second parallel grid axis over query tiles
    # would keep both TensorCores busy; omitted to keep the kernel robust at arbitrary S.
    return pl.pallas_call(
        kern,
        out_shape=jax.ShapeDtypeStruct((B, S, D), qkv.dtype),
        grid=(B,),
        in_specs=[pl.BlockSpec((1, S, D3), lambda b: (b, 0, 0))],
        out_specs=pl.BlockSpec((1, S, D), lambda b: (b, 0, 0)),
        compiler_params=pltpu.CompilerParams(
            dimension_semantics=("parallel",),
            vmem_limit_bytes=_vmem_limit_bytes()),
        cost_estimate=pl.CostEstimate(
            flops=int(4 * B * n_heads * S * S * Dh),
            transcendentals=int(B * n_heads * S * S),
            bytes_accessed=int((B * S * D3 + B * S * D) * itemsize)),
    )(qkv)


# ----------------------------------------------------------------------------
# Transformer building blocks (thin JAX glue around the Pallas kernels)
# ----------------------------------------------------------------------------

def residual_block(x, p, n_heads, causal):
    B, S, D = x.shape
    x2 = x.reshape(B * S, D)
    # fused LN1 + QKV projection (+bias)
    qkv = matmul_bias(x2, p["w_qkv"], p["b_qkv"],
                      ln=(p["ln1_g"], p["ln1_b"])).reshape(B, S, 3 * D)
    attn = attention(qkv, n_heads, causal).reshape(B * S, D)
    x2 = matmul_bias(attn, p["w_o"], p["b_o"], residual=x2)          # fused residual add
    # fused LN2 + MLP fc (+bias) + QuickGELU
    h = matmul_bias(x2, p["w_fc"], p["b_fc"], activation="quick_gelu",
                    ln=(p["ln2_g"], p["ln2_b"]))
    x2 = matmul_bias(h, p["w_proj"], p["b_proj"], residual=x2)        # fused residual add
    return x2.reshape(B, S, D)


# ----------------------------------------------------------------------------
# Image encoder (clip_model.visual): returns the three feature levels the
# PyTorch module expects (last-hidden, ln_post output, projected)
# ----------------------------------------------------------------------------

def image_encoder(image, p, cfg):
    B, C, H, W = image.shape
    P = cfg["patch"]
    nH, nW = H // P, W // P
    D = cfg["width"]
    # Conv2d(kernel=P, stride=P) as patch-flatten + matmul (channel-major within patch).
    patches = image.reshape(B, C, nH, P, nW, P).transpose(0, 2, 4, 1, 3, 5)
    patches = patches.reshape(B * nH * nW, C * P * P)
    x = matmul_bias(patches, p["conv_w"]).reshape(B, nH * nW, D)
    cls = jnp.broadcast_to(p["class_emb"].reshape(1, 1, D), (B, 1, D)).astype(x.dtype)
    x = jnp.concatenate([cls, x], axis=1)                 # [B, T, D]
    T = x.shape[1]
    x = x + p["pos_emb"][None, :T, :]
    x = layernorm(x.reshape(B * T, D), p["ln_pre_g"], p["ln_pre_b"]).reshape(B, T, D)

    n_layers = len(p["blocks"])
    # TODO(synk): "image_features_last" is interpreted as the hidden state after the
    # second-to-last transformer block (input to the last block), matching the common
    # multi-level CLIP visual encoder modification.
    feats_last = x
    for li, blk in enumerate(p["blocks"]):
        x = residual_block(x, blk, cfg["heads"], causal=False)
        if li == n_layers - 2:
            feats_last = x
    x_ln = layernorm(x.reshape(B * T, D), p["ln_post_g"], p["ln_post_b"]).reshape(B, T, D)
    x_proj = matmul_bias(x_ln.reshape(B * T, D), p["proj"]).reshape(B, T, cfg["embed_dim"])
    return feats_last, x_ln, x_proj


# ----------------------------------------------------------------------------
# Text encoder (CoOp TextEncoder): prompts + pos_emb -> causal transformer ->
# ln_final -> gather EOT token -> @ text_projection
# ----------------------------------------------------------------------------

def text_encoder(prompts, tokenized_prompts, p, cfg):
    N, L, D = prompts.shape
    x = prompts + p["pos_emb"][None, :L, :]
    for blk in p["blocks"]:
        x = residual_block(x, blk, cfg["heads"], causal=True)   # causal mask built in-kernel
    x = layernorm(x.reshape(N * L, D), p["ln_final_g"], p["ln_final_b"]).reshape(N, L, D)
    eot = jnp.argmax(tokenized_prompts, axis=-1)           # glue: EOT-token position
    x_eot = x[jnp.arange(N), eot]                          # [N, D]
    return matmul_bias(x_eot, p["text_proj"])              # [N, embed_dim]


# ----------------------------------------------------------------------------
# CustomCLIPCoop.forward
# ----------------------------------------------------------------------------

def custom_clip_coop_forward(params, cfg, image=None, label=None, get_image=False,
                             get_texts=False, prompts=None, tokenized_prompts=None,
                             training=True):
    del label  # unused in the reference forward
    if get_texts:
        return text_encoder(prompts, tokenized_prompts, params["text"], cfg)

    feats_last, feats_non_proj, feats_proj = image_encoder(image, params["visual"], cfg)
    if get_image:
        return feats_proj[:, 0]

    image_features_last = feats_last[:, 0]
    image_features_non_proj = feats_non_proj[:, 0]
    image_features = feats_proj[:, 0]

    if training:
        text_features = text_encoder(prompts, tokenized_prompts, params["text"], cfg)
        # reference: logits = image_features @ text_features.t() (no norm / logit_scale)
        logits = matmul_bias(image_features, text_features.T)
        return (text_features, image_features, logits,
                [image_features_last, image_features_non_proj, image_features],
                image_features)
    else:
        return jnp.concatenate([image_features_non_proj, image_features], axis=1)


# ----------------------------------------------------------------------------
# Deterministic parameter construction
# ----------------------------------------------------------------------------

def _nrm(key, shape, scale=0.02):
    return (scale * jax.random.normal(key, shape, jnp.float32)).astype(jnp.float32)


def _make_block(key, D):
    ks = jax.random.split(key, 6)
    return dict(
        ln1_g=jnp.ones((D,), jnp.float32), ln1_b=jnp.zeros((D,), jnp.float32),
        w_qkv=_nrm(ks[0], (D, 3 * D)), b_qkv=jnp.zeros((3 * D,), jnp.float32),
        w_o=_nrm(ks[1], (D, D)), b_o=jnp.zeros((D,), jnp.float32),
        ln2_g=jnp.ones((D,), jnp.float32), ln2_b=jnp.zeros((D,), jnp.float32),
        w_fc=_nrm(ks[2], (D, 4 * D)), b_fc=jnp.zeros((4 * D,), jnp.float32),
        w_proj=_nrm(ks[3], (4 * D, D)), b_proj=jnp.zeros((D,), jnp.float32),
    )


def init_params(key, cfg):
    D, E, P, C = cfg["width"], cfg["embed_dim"], cfg["patch"], cfg["channels"]
    T_img = (cfg["image_size"] // P) ** 2 + 1
    L = cfg["seq_len"]
    kv, kt, k1, k2, k3, k4, k5, k6 = jax.random.split(key, 8)
    vis_blocks = [_make_block(k, D) for k in jax.random.split(kv, cfg["layers"])]
    txt_blocks = [_make_block(k, D) for k in jax.random.split(kt, cfg["layers"])]
    visual = dict(
        conv_w=_nrm(k1, (C * P * P, D)),
        class_emb=_nrm(k2, (D,)),
        pos_emb=_nrm(k3, (T_img, D)),
        ln_pre_g=jnp.ones((D,), jnp.float32), ln_pre_b=jnp.zeros((D,), jnp.float32),
        blocks=vis_blocks,
        ln_post_g=jnp.ones((D,), jnp.float32), ln_post_b=jnp.zeros((D,), jnp.float32),
        proj=_nrm(k4, (D, E)),
    )
    text = dict(
        pos_emb=_nrm(k5, (L, D)),
        blocks=txt_blocks,
        ln_final_g=jnp.ones((D,), jnp.float32), ln_final_b=jnp.zeros((D,), jnp.float32),
        text_proj=_nrm(k6, (D, E)),
    )
    # logit_scale exists on the module but is not used inside forward()
    logit_scale = jnp.array(jnp.log(1.0 / 0.07), jnp.float32)
    return dict(visual=visual, text=text, logit_scale=logit_scale)


# ----------------------------------------------------------------------------
# Demo
# ----------------------------------------------------------------------------

if __name__ == "__main__":
    cfg = dict(image_size=16, patch=8, channels=3, width=32, heads=4,
               layers=2, embed_dim=16, seq_len=8, n_cls=4)

    root = jax.random.PRNGKey(0)
    k_params, k_img, k_prompts, k_tok = jax.random.split(root, 4)
    params = init_params(k_params, cfg)

    # inputs (PyTorch NCHW image layout)
    image = jax.random.normal(k_img, (2, cfg["channels"], cfg["image_size"], cfg["image_size"]),
                              jnp.float32)
    prompts = 0.02 * jax.random.normal(k_prompts, (cfg["n_cls"], cfg["seq_len"], cfg["width"]),
                                       jnp.float32)
    tokenized_prompts = jax.random.randint(k_tok, (cfg["n_cls"], cfg["seq_len"]), 1, 100,
                                           dtype=jnp.int32)
    # place an EOT (max) token so argmax(dim=-1) picks it, as CLIP/CoOp does
    eot_pos = cfg["seq_len"] - 2
    tokenized_prompts = tokenized_prompts.at[:, eot_pos].set(49407)

    # training-mode path (image encoder + text encoder + logits)
    text_features, image_features, logits, feats_list, img_feats_again = custom_clip_coop_forward(
        params, cfg, image=image, prompts=prompts, tokenized_prompts=tokenized_prompts,
        training=True)

    # get_texts path
    tf_only = custom_clip_coop_forward(params, cfg, get_texts=True, prompts=prompts,
                                       tokenized_prompts=tokenized_prompts)
    # get_image path
    if_only = custom_clip_coop_forward(params, cfg, image=image, get_image=True)
    # eval path (cat of non-proj and proj CLS features)
    eval_out = custom_clip_coop_forward(params, cfg, image=image, training=False)

    for t in (text_features, image_features, logits, *feats_list, tf_only, if_only, eval_out):
        jax.block_until_ready(t)

    assert text_features.shape == (cfg["n_cls"], cfg["embed_dim"])
    assert image_features.shape == (2, cfg["embed_dim"])
    assert logits.shape == (2, cfg["n_cls"])
    assert feats_list[0].shape == (2, cfg["width"])
    assert feats_list[1].shape == (2, cfg["width"])
    assert eval_out.shape == (2, cfg["width"] + cfg["embed_dim"])

    print("KERNEL_OK")
</pallas_src>

<mosaic_0001>
module attributes {stable_mosaic.version = 11 : i64} {
  func.func @_mm_kernel(%arg0: i32, %arg1: i32, %arg2: i32, %arg3: memref<8x192xf32, #tpu.memory_space<vmem>>, %arg4: memref<192x32xf32, #tpu.memory_space<vmem>>, %arg5: memref<8x32xf32, #tpu.memory_space<vmem>>, %arg6: memref<8x32xf32, #tpu.memory_space<vmem>>) attributes {dimension_semantics = [#tpu.dimension_semantics<parallel>, #tpu.dimension_semantics<parallel>, #tpu.dimension_semantics<arbitrary>], iteration_bounds = array<i64: 1, 1, 1>, scalar_prefetch = 0 : i64, scratch_operands = 1 : i64, tpu.core_type = #tpu.core_type<tc>, window_params = [{transform_indices = @transform_0, window_bounds = array<i64: 8, 192>}, {transform_indices = @transform_1, window_bounds = array<i64: 192, 32>}, {transform_indices = @transform_2, window_bounds = array<i64: 8, 32>}]} {
    %c0_i32 = arith.constant 0 : i32
    %0 = arith.cmpi eq, %arg2, %c0_i32 : i32
    %1 = arith.extui %0 : i1 to i32
    %c0_i32_0 = arith.constant 0 : i32
    %2 = arith.cmpi ne, %1, %c0_i32_0 : i32
    scf.if %2 {
      %cst_10 = arith.constant 0.000000e+00 : f32
      %14 = vector.broadcast %cst_10 : f32 to vector<8x32xf32>
      %c0_11 = arith.constant 0 : index
      %c0_12 = arith.constant 0 : index
      %15 = vector.load %arg6[%c0_11, %c0_12] : memref<8x32xf32, #tpu.memory_space<vmem>>, vector<8x32xf32>
      tpu.vector_store %arg6[%c0_11, %c0_12], %14 {strides = array<i32>} : memref<8x32xf32, #tpu.memory_space<vmem>>, vector<8x32xf32>,
    } else {
    }
    %c0 = arith.constant 0 : index
    %c0_1 = arith.constant 0 : index
    %3 = vector.load %arg3[%c0, %c0_1] : memref<8x192xf32, #tpu.memory_space<vmem>>, vector<8x192xf32>
    %4 = arith.truncf %3 : vector<8x192xf32> to vector<8x192xbf16>
    %c0_2 = arith.constant 0 : index
    %c0_3 = arith.constant 0 : index
    %5 = vector.load %arg6[%c0_2, %c0_3] : memref<8x32xf32, #tpu.memory_space<vmem>>, vector<8x32xf32>
    %c0_4 = arith.constant 0 : index
    %c0_5 = arith.constant 0 : index
    %6 = vector.load %arg4[%c0_4, %c0_5] : memref<192x32xf32, #tpu.memory_space<vmem>>, vector<192x32xf32>
    %7 = arith.truncf %6 : vector<192x32xf32> to vector<192x32xbf16>
    %cst = arith.constant dense<0.000000e+00> : vector<8x32xf32>
    %8 = tpu.matmul %4, %7, %cst {dimension_numbers = #tpu.dot_dimension_numbers<[1], [0], [0], [1], [0, 0, 1, 1], [], []>} : vector<8x192xbf16>, vector<192x32xbf16>, vector<8x32xf32> -> vector<8x32xf32>
    %9 = arith.addf %5, %8 : vector<8x32xf32>
    %c0_6 = arith.constant 0 : index
    %c0_7 = arith.constant 0 : index
    %10 = vector.load %arg6[%c0_6, %c0_7] : memref<8x32xf32, #tpu.memory_space<vmem>>, vector<8x32xf32>
    tpu.vector_store %arg6[%c0_6, %c0_7], %9 {strides = array<i32>} : memref<8x32xf32, #tpu.memory_space<vmem>>, vector<8x32xf32>,
    %c0_i32_8 = arith.constant 0 : i32
    %11 = arith.cmpi eq, %arg2, %c0_i32_8 : i32
    %12 = arith.extui %11 : i1 to i32
    %c0_i32_9 = arith.constant 0 : i32
    %13 = arith.cmpi ne, %12, %c0_i32_9 : i32
    scf.if %13 {
      %c0_10 = arith.constant 0 : index
      %c0_11 = arith.constant 0 : index
      %14 = vector.load %arg6[%c0_10, %c0_11] : memref<8x32xf32, #tpu.memory_space<vmem>>, vector<8x32xf32>
      %c0_12 = arith.constant 0 : index
      %c0_13 = arith.constant 0 : index
      %15 = vector.load %arg5[%c0_12, %c0_13] : memref<8x32xf32, #tpu.memory_space<vmem>>, vector<8x32xf32>
      tpu.vector_store %arg5[%c0_12, %c0_13], %14 {strides = array<i32>} : memref<8x32xf32, #tpu.memory_space<vmem>>, vector<8x32xf32>,
    } else {
    }
    return
  }
  func.func @transform_0(%arg0: i32, %arg1: i32, %arg2: i32) -> (i32, i32) {
    %c0_i32 = arith.constant 0 : i32
    return %arg0, %arg2 : i32, i32
  }
  func.func @transform_1(%arg0: i32, %arg1: i32, %arg2: i32) -> (i32, i32) {
    %c0_i32 = arith.constant 0 : i32
    return %arg2, %arg1 : i32, i32
  }
  func.func @transform_2(%arg0: i32, %arg1: i32, %arg2: i32) -> (i32, i32) {
    %c0_i32 = arith.constant 0 : i32
    return %arg0, %arg1 : i32, i32
  }
}

</mosaic_0001>

<llo_original>
// kernel: tpu_custom_call.1
$region0: #{tpu_custom_call.1}
  #allocation0 [shape = 'u32[]', space=smem, size = 0x4, offset = 0x4, fixed_abs, tag = 'smem constant byte address 0x4 - core index']
  #allocation1 [shape = 'u32[72,128]{1,0:T(1,128)}', space=vmem, size = 0x9000, scoped, tag = 'internal scratch']
  #allocation2 [shape = 'f32[8,32]{1,0:T(8,128)}', space=vmem, size = 0x1000, scoped, tag = 'scratch operand']
  %s0 = inlined_call_operand.vmem [shape: f32[8,192], index: 0, kind: input, shape index: {}]
  %s1 = inlined_call_operand.vmem [shape: f32[192,32], index: 1, kind: input, shape index: {}]
  %s2 = inlined_call_operand.hbm [shape: f32[8,32], index: 2, kind: output, shape index: {}]
  %s3 = sld [smem:[#allocation0]]
  $region26: #{tpu_custom_call.1} parent=0
    _
  %s5 = ssub.s32 1, %s3
  %s6 = scalar_select 0, %s5, %s3
  $region1: #{tpu_custom_call.1} parent=0
    #allocation3 [shape = 'u8[4096]{0}', space=vmem, size = 0x1000, scoped, tag = 'output window, operand 0, single buffered']
    #allocation4 [shape = 's32[1]{0}', space=sflag, size = 0x4, scoped, tag = 'scoped memory for tpu_custom_call.1']
    %7 = vsyncpa [#allocation4], 0
    // Predicated region
    $region2: #{tpu_custom_call.1} parent=1 // pred_check
      _
    $region3: #{tpu_custom_call.1} parent=1 // pred_check_branch
      %9 = sbr.rel (0) target = $region5
    $region4: #{tpu_custom_call.1} parent=1 // pred_region
      _
    $region5: #{tpu_custom_call.1} parent=1 // pred_fallthru
      _
    // Predicated region
    $region6: #{tpu_custom_call.1} parent=1 // pred_check
      _
    $region7: #{tpu_custom_call.1} parent=1 // pred_check_branch
      %11 = sbr.rel (0) target = $region9
    $region8: #{tpu_custom_call.1} parent=1 // pred_region
      _
    $region9: #{tpu_custom_call.1} parent=1 // pred_fallthru
      _
    %p13 = scmp.eq.s32.totalorder 0, 0
    // Predicated region
    $region10: #{tpu_custom_call.1} parent=1 // pred_check
      %p14 = pneg %p13
    $region11: #{tpu_custom_call.1} parent=1 // pred_check_branch
      %16 = sbr.rel (%p14) target = $region13
    $region12: #{tpu_custom_call.1} parent=1 // pred_region
      %vm17 = vcmask 261120
      %18 = vst.msk [vmem:[#allocation2] sm:$0xff] %vm17, 0.0
    $region13: #{tpu_custom_call.1} parent=1 // pred_fallthru
      _
    %v19 = vld [vmem:[%s0] sm:$0xff]
    %v20 = vld [vmem:[%s0 + $0x8] sm:$0xff]
    %v21 = vpack.c.bf16 %v19, %v19
    %v22 = vpack.c.bf16 %v20, %v20
    %v23 = vld [vmem:[#allocation2] sm:$0xff]
    %v24 = vld [vmem:[%s1] sm:$0xff]
    %v25 = vld [vmem:[%s1 + $0x8] sm:$0xff]
    %v26 = vld [vmem:[%s1 + $0x10] sm:$0xff]
    %v27 = vld [vmem:[%s1 + $0x18] sm:$0xff]
    %v28 = vld [vmem:[%s1 + $0x20] sm:$0xff]
    %v29 = vld [vmem:[%s1 + $0x28] sm:$0xff]
    %v30 = vld [vmem:[%s1 + $0x30] sm:$0xff]
    %v31 = vld [vmem:[%s1 + $0x38] sm:$0xff]
    %v32 = vld [vmem:[%s1 + $0x40] sm:$0xff]
    %v33 = vld [vmem:[%s1 + $0x48] sm:$0xff]
    %v34 = vld [vmem:[%s1 + $0x50] sm:$0xff]
    %v35 = vld [vmem:[%s1 + $0x58] sm:$0xff]
    %v36 = vld [vmem:[%s1 + $0x60] sm:$0xff]
    %v37 = vld [vmem:[%s1 + $0x68] sm:$0xff]
    %v38 = vld [vmem:[%s1 + $0x70] sm:$0xff]
    %v39 = vld [vmem:[%s1 + $0x78] sm:$0xff]
    %v40 = vld [vmem:[%s1 + $0x80] sm:$0xff]
    %v41 = vld [vmem:[%s1 + $0x88] sm:$0xff]
    %v42 = vld [vmem:[%s1 + $0x90] sm:$0xff]
    %v43 = vld [vmem:[%s1 + $0x98] sm:$0xff]
    %v44 = vld [vmem:[%s1 + $0xa0] sm:$0xff]
    %v45 = vld [vmem:[%s1 + $0xa8] sm:$0xff]
    %v46 = vld [vmem:[%s1 + $0xb0] sm:$0xff]
    %v47 = vld [vmem:[%s1 + $0xb8] sm:$0xff]
    %v48 = vpack.c.bf16 %v25, %v24
    %v49 = vpack.c.bf16 %v27, %v26
    %v50 = vpack.c.bf16 %v29, %v28
    %v51 = vpack.c.bf16 %v31, %v30
    %v52 = vpack.c.bf16 %v33, %v32
    %v53 = vpack.c.bf16 %v35, %v34
    %v54 = vpack.c.bf16 %v37, %v36
    %v55 = vpack.c.bf16 %v39, %v38
    %v56 = vpack.c.bf16 %v41, %v40
    %v57 = vpack.c.bf16 %v43, %v42
    %v58 = vpack.c.bf16 %v45, %v44
    %v59 = vpack.c.bf16 %v47, %v46
    %vm60 = vcmask 523264
    %v62 = vsel %vm60, %v22, 0
    %64 = vmatpush.bf16.msra.mxu0 %v55
    %65 = vmatpush.bf16.msra.mxu0 %v54
    %66 = vmatpush.bf16.msra.mxu0 %v53
    %67 = vmatpush.bf16.msra.mxu0 %v52
    %68 = vmatpush.bf16.msra.mxu0 %v51
    %69 = vmatpush.bf16.msra.mxu0 %v50
    %70 = vmatpush.bf16.msra.mxu0 %v49
    %71 = vmatpush.bf16.msra.mxu0 %v48
    %72 = vmatmul.bf16.gmra.mxu0 %v21
    %v73 = vpop.f32.mrf.mxu0
    %v74 = vadd.f32 0.0, %v73
    %v75 = vpop.f32.mrf.mxu0
    %76 = vdwg.mxu0
    %77 = vmatpush.bf16.msra.mxu0 0
    %78 = vmatpush.bf16.msra.mxu0 0
    %79 = vmatpush.bf16.msra.mxu0 0
    %80 = vmatpush.bf16.msra.mxu0 0
    %81 = vmatpush.bf16.msra.mxu0 %v59
    %82 = vmatpush.bf16.msra.mxu0 %v58
    %83 = vmatpush.bf16.msra.mxu0 %v57
    %84 = vmatpush.bf16.msra.mxu0 %v56
    %85 = vmatmul.bf16.gmra.mxu0 %v62
    %v86 = vpop.f32.mrf.mxu0
    %v87 = vadd.f32 %v74, %v86
    %v88 = vpop.f32.mrf.mxu0
    %89 = vdwg.mxu0
    %v90 = vadd.f32 %v23, %v87
    %vm91 = vcmask 261120
    %92 = vst.msk [vmem:[#allocation2] sm:$0xff] %vm91, %v90
    // Predicated region
    $region14: #{tpu_custom_call.1} parent=1 // pred_check
      %p93 = pneg %p13
    $region15: #{tpu_custom_call.1} parent=1 // pred_check_branch
      %95 = sbr.rel (%p93) target = $region17
    $region16: #{tpu_custom_call.1} parent=1 // pred_region
      %v96 = vld [vmem:[#allocation2] sm:$0xff]
      %97 = vst.msk [vmem:[#allocation3] sm:$0xff] %vm91, %v96
    $region17: #{tpu_custom_call.1} parent=1 // pred_fallthru
      _
    // Predicated region
    $region18: #{tpu_custom_call.1} parent=1 // pred_check
      _
    $region19: #{tpu_custom_call.1} parent=1 // pred_check_branch
      %99 = sbr.rel (0) target = $region21
    $region20: #{tpu_custom_call.1} parent=1 // pred_region
      %101 = vsyncadd [#allocation4], 0
      %s103 = sshll.u32 [#allocation3], 4
      %s104 = int_to_ptr.vmem [resolvable:$true] %s103
      %s105 = sshll.u32 %s2, 4
      %s106 = int_to_ptr.hbm [resolvable:$true] %s105
      %108 = dma.vmem_to_hbm [thread:$0]  %s104, 128, %s106, [#allocation4]
    $region21: #{tpu_custom_call.1} parent=1 // pred_fallthru
      _
    // Predicated region
    $region22: #{tpu_custom_call.1} parent=1 // pred_check
      _
    $region23: #{tpu_custom_call.1} parent=1 // pred_check_branch
      %110 = sbr.rel (0) target = $region25
    $region24: #{tpu_custom_call.1} parent=1 // pred_region
      %112 = dma.done [#allocation4], 128
    $region25: #{tpu_custom_call.1} parent=1 // pred_fallthru
      _
    %113 = vsyncpa [#allocation4], 1

</llo_original>
